<compile_context>
chip_gen: v5e
topology: v5e:2x2
jax: 0.10.0
libtpu: 0.0.40
codegen_flags: <defaults>
</compile_context>

<pallas_src>
import math

import jax
import jax.numpy as jnp
from jax.experimental import pallas as pl
from jax.experimental.pallas import tpu as pltpu


LANE = 128
MAX_ROWS_TILE = 1024  # 1024 x 128 x 4B = 512 KiB per f32 buffer; mult. of 8/16/32


def _copy_kernel(x_ref, o_ref):
    # Identity copy of the current (rows_tile, 128) tile. This is the entire
    # "forward pass" of View when a materialized copy is requested.
    o_ref[...] = x_ref[...]


def _resolve_shape(total_elems, shape):
    """Resolve a single -1 entry like torch.Tensor.view does."""
    shape = list(shape)
    if shape.count(-1) > 1:
        raise ValueError("only one dimension can be inferred")
    if -1 in shape:
        known = 1
        for s in shape:
            if s != -1:
                known *= s
        if known == 0 or total_elems % known != 0:
            raise ValueError(f"cannot view {total_elems} elements as {tuple(shape)}")
        shape[shape.index(-1)] = total_elems // known
    if math.prod(shape) != total_elems:
        raise ValueError(f"shape {tuple(shape)} invalid for {total_elems} elements")
    return tuple(shape)


def view_pallas(x, *shape, materialize=False):
    """Equivalent of View(*shape)(x).

    materialize=False (default): metadata-only reshape, exactly what
    torch.Tensor.view is for contiguous tensors — no kernel, no HBM traffic.

    materialize=True: stream the data through a Pallas identity-copy kernel,
    returning a freshly written buffer with the requested shape.
    """
    out_shape = _resolve_shape(x.size, shape)

    if not materialize:
        # Fast path: jnp.reshape of a contiguous array is a bitcast in XLA.
        return x.reshape(out_shape)

    # --- Pallas copy path -------------------------------------------------
    flat = x.reshape(-1)
    n = flat.shape[0]

    # Only pad to a lane (128) multiple when strictly necessary; pad is <128
    # elements and the common capsule-net shapes never hit it.
    pad = (-n) % LANE
    if pad:
        flat = jnp.pad(flat, (0, pad))
    rows = flat.shape[0] // LANE
    slab = flat.reshape(rows, LANE)

    # Large, dtype-safe tile. Full-array block when small (single grid step);
    # otherwise 1024 rows, with the trailing partial block handled by Pallas'
    # out-of-bounds block semantics (padded reads, dropped writes) — no
    # wrapper-side row padding needed.
    if rows <= MAX_ROWS_TILE:
        rows_tile = rows
    else:
        rows_tile = MAX_ROWS_TILE
    grid = (pl.cdiv(rows, rows_tile),)

    out_slab = pl.pallas_call(
        _copy_kernel,
        out_shape=jax.ShapeDtypeStruct((rows, LANE), x.dtype),
        grid_spec=pltpu.PrefetchScalarGridSpec(
            num_scalar_prefetch=0,
            grid=grid,
            in_specs=[pl.BlockSpec((rows_tile, LANE), lambda i: (i, 0))],
            out_specs=pl.BlockSpec((rows_tile, LANE), lambda i: (i, 0)),
        ),
        compiler_params=pltpu.CompilerParams(
            dimension_semantics=("parallel",),  # lets v7x shard across its 2 TCs
        ),
    )(slab)

    if pad:
        return out_slab.reshape(-1)[:n].reshape(out_shape)
    return out_slab.reshape(out_shape)


if __name__ == "__main__":
    key = jax.random.PRNGKey(0)
    # Small NCHW-like input consistent with a capsule-net feature map.
    x = jax.random.normal(key, (2, 4, 16, 16), dtype=jnp.float32)
    target_shape = (2, -1)
    ref = x.reshape(2, -1)

    # 1) Default path: metadata-only reshape (what torch .view actually is).
    y_fast = view_pallas(x, *target_shape)
    y_fast = jax.block_until_ready(y_fast)
    assert y_fast.shape == ref.shape and y_fast.dtype == ref.dtype
    assert bool(jnp.array_equal(y_fast, ref))

    # 2) Materialized path: exercise the Pallas identity-copy kernel once.
    y_kernel = view_pallas(x, *target_shape, materialize=True)
    y_kernel = jax.block_until_ready(y_kernel)
    assert y_kernel.shape == ref.shape and y_kernel.dtype == ref.dtype
    assert bool(jnp.array_equal(y_kernel, ref))

    print("KERNEL_OK")
</pallas_src>

<mosaic_0001>
module attributes {stable_mosaic.version = 11 : i64} {
  func.func @_copy_kernel(%arg0: i32, %arg1: memref<16x128xf32, #tpu.memory_space<vmem>>, %arg2: memref<16x128xf32, #tpu.memory_space<vmem>>) attributes {dimension_semantics = [#tpu.dimension_semantics<parallel>], iteration_bounds = array<i64: 1>, scalar_prefetch = 0 : i64, scratch_operands = 0 : i64, tpu.core_type = #tpu.core_type<tc>, window_params = [{transform_indices = @transform_0, window_bounds = array<i64: 16, 128>}, {transform_indices = @transform_1, window_bounds = array<i64: 16, 128>}]} {
    %c0 = arith.constant 0 : index
    %c0_0 = arith.constant 0 : index
    %0 = vector.load %arg1[%c0, %c0_0] : memref<16x128xf32, #tpu.memory_space<vmem>>, vector<16x128xf32>
    %c0_1 = arith.constant 0 : index
    %c0_2 = arith.constant 0 : index
    %1 = vector.load %arg2[%c0_1, %c0_2] : memref<16x128xf32, #tpu.memory_space<vmem>>, vector<16x128xf32>
    tpu.vector_store %arg2[%c0_1, %c0_2], %0 {strides = array<i32>} : memref<16x128xf32, #tpu.memory_space<vmem>>, vector<16x128xf32>,
    return
  }
  func.func @transform_0(%arg0: i32) -> (i32, i32) {
    %c0_i32 = arith.constant 0 : i32
    %c0_i32_0 = arith.constant 0 : i32
    return %arg0, %c0_i32 : i32, i32
  }
  func.func @transform_1(%arg0: i32) -> (i32, i32) {
    %c0_i32 = arith.constant 0 : i32
    %c0_i32_0 = arith.constant 0 : i32
    return %arg0, %c0_i32 : i32, i32
  }
}

</mosaic_0001>

<llo_original>
// kernel: tpu_custom_call.1
$region0: #{tpu_custom_call.1}
  #allocation0 [shape = 'u32[]', space=smem, size = 0x4, offset = 0x4, fixed_abs, tag = 'smem constant byte address 0x4 - core index']
  #allocation1 [shape = 'u32[72,128]{1,0:T(1,128)}', space=vmem, size = 0x9000, scoped, tag = 'internal scratch']
  %s0 = inlined_call_operand.hbm [shape: f32[16,128], index: 0, kind: input, shape index: {}]
  %s1 = inlined_call_operand.hbm [shape: f32[16,128], index: 1, kind: output, shape index: {}]
  %s2 = sld [smem:[#allocation0]]
  $region18: #{tpu_custom_call.1} parent=0
    _
  %s4 = ssub.s32 1, %s2
  %s5 = scalar_select 0, %s4, %s2
  $region1: #{tpu_custom_call.1} parent=0
    #allocation2 [shape = 'u8[8192]{0}', space=vmem, size = 0x2000, scoped, tag = 'input window, operand 0, single buffered']
    #allocation3 [shape = 's32[1]{0}', space=sflag, size = 0x4, scoped, tag = 'scoped memory for tpu_custom_call.1']
    #allocation4 [shape = 's32[1]{0}', space=sflag, size = 0x4, scoped, tag = 'scoped memory for tpu_custom_call.1']
    #allocation5 [shape = 'u8[8192]{0}', space=vmem, size = 0x2000, scoped, tag = 'output window, operand 0, single buffered']
    %6 = vsyncpa [#allocation3], 0
    %7 = vsyncpa [#allocation4], 0
    // Predicated region
    $region2: #{tpu_custom_call.1} parent=1 // pred_check
      _
    $region3: #{tpu_custom_call.1} parent=1 // pred_check_branch
      %9 = sbr.rel (0) target = $region5
    $region4: #{tpu_custom_call.1} parent=1 // pred_region
      %11 = vsyncadd [#allocation3], 0
      %s12 = sshll.u32 %s0, 4
      %s13 = int_to_ptr.hbm [resolvable:$true] %s12
      %s14 = sshll.u32 [#allocation2], 4
      %s15 = int_to_ptr.vmem [resolvable:$true] %s14
      %20 = dma.hbm_to_vmem [thread:$0]  %s13, 256, %s15, [#allocation3], 128, 128, 8
    $region5: #{tpu_custom_call.1} parent=1 // pred_fallthru
      _
    // Predicated region
    $region6: #{tpu_custom_call.1} parent=1 // pred_check
      _
    $region7: #{tpu_custom_call.1} parent=1 // pred_check_branch
      %22 = sbr.rel (0) target = $region9
    $region8: #{tpu_custom_call.1} parent=1 // pred_region
      %24 = dma.done [#allocation3], 256
    $region9: #{tpu_custom_call.1} parent=1 // pred_fallthru
      _
    %v25 = vld [vmem:[#allocation2] sm:$0xff]
    %v26 = vld [vmem:[#allocation2 + $0x8] sm:$0xff]
    %27 = vst [vmem:[#allocation5] sm:$0xff] %v25
    %28 = vst [vmem:[#allocation5 + $0x8] sm:$0xff] %v26
    // Predicated region
    $region10: #{tpu_custom_call.1} parent=1 // pred_check
      _
    $region11: #{tpu_custom_call.1} parent=1 // pred_check_branch
      %30 = sbr.rel (0) target = $region13
    $region12: #{tpu_custom_call.1} parent=1 // pred_region
      %32 = vsyncadd [#allocation4], 0
      %s33 = sshll.u32 [#allocation5], 4
      %s34 = int_to_ptr.vmem [resolvable:$true] %s33
      %s35 = sshll.u32 %s1, 4
      %s36 = int_to_ptr.hbm [resolvable:$true] %s35
      %41 = dma.vmem_to_hbm [thread:$0]  %s34, 256, %s36, [#allocation4], 128, 128, 8
    $region13: #{tpu_custom_call.1} parent=1 // pred_fallthru
      _
    // Predicated region
    $region14: #{tpu_custom_call.1} parent=1 // pred_check
      _
    $region15: #{tpu_custom_call.1} parent=1 // pred_check_branch
      %43 = sbr.rel (0) target = $region17
    $region16: #{tpu_custom_call.1} parent=1 // pred_region
      %45 = dma.done [#allocation4], 256
    $region17: #{tpu_custom_call.1} parent=1 // pred_fallthru
      _
    %46 = vsyncpa [#allocation3], 1
    %47 = vsyncpa [#allocation4], 1

</llo_original>
